<compile_context>
chip_gen: v5e
topology: v5e:2x2
jax: 0.10.0
libtpu: 0.0.40
codegen_flags: <defaults>
</compile_context>

<pallas_src>
import random
from collections import defaultdict
from functools import partial

import numpy as np
import jax
import jax.numpy as jnp
from jax import lax
from jax.experimental import pallas as pl
from jax.experimental.pallas import tpu as pltpu


def _round_up(x, m):
    return (x + m - 1) // m * m


_VMEM_LIMIT_BYTES = 48 * 1024 * 1024     # explicit scoped-VMEM limit for the kernel
_VMEM_WORKING_BUDGET = 36 * 1024 * 1024  # what tile selection is allowed to plan for


# ----------------------------------------------------------------------------
# Pallas kernel: fused (binary mask @ embed) -> mean -> split-weight matmuls
#                -> ReLU, output emitted already transposed as (E_pad, tb).
# ----------------------------------------------------------------------------
def encoder_kernel(mask_ref, embed_ref, self_ref, inv_ref, ws_ref, wn_ref,
                   out_ref, acc_ref):
    k = pl.program_id(1)

    @pl.when(k == 0)
    def _():
        acc_ref[...] = jnp.zeros_like(acc_ref)

    # Neighbor-sum partial over this U tile: (tb,tu) @ (tu,F) -> (tb,F), f32 acc.
    # Mask is binary int8; the bf16 cast is exact (0/1) and keeps the MXU on the
    # native bf16 datapath while the HBM stream stays 1 byte/element.
    acc_ref[...] += jnp.dot(mask_ref[...].astype(jnp.bfloat16), embed_ref[...],
                            preferred_element_type=jnp.float32)

    @pl.when(k == pl.num_programs(1) - 1)
    def _():
        # Mean aggregation: apply the 1/num_neigh row scale in f32, single bf16 cast.
        neigh = (acc_ref[...] * inv_ref[...]).astype(jnp.bfloat16)        # (tb, F)
        # Split-weight matmuls replace cat([self, neigh], dim=1); emit out^T directly:
        #   out[:, tile] = relu(W_self @ self^T + W_neigh @ neigh^T)  -> (E_pad, tb)
        self_part = lax.dot_general(
            ws_ref[...], self_ref[...],
            dimension_numbers=(((1,), (1,)), ((), ())),
            preferred_element_type=jnp.float32)
        neigh_part = lax.dot_general(
            wn_ref[...], neigh,
            dimension_numbers=(((1,), (1,)), ((), ())),
            preferred_element_type=jnp.float32)
        out_ref[...] = jnp.maximum(self_part + neigh_part, 0.0)   # f32 ReLU, lane-dense


# ----------------------------------------------------------------------------
# Host-side helpers
# ----------------------------------------------------------------------------
def prepare_encoder_weights(weight):
    """One-time preprocessing of the torch (E, 2F) weight: split into
    W_self = W[:, :F] / W_neigh = W[:, F:] (self features come first in the
    concat), pad E to a 128 multiple and cast to bf16. Cache the result across
    forward calls."""
    E, two_f = weight.shape
    assert two_f % 2 == 0, "weight must be (embed_dim, 2*feat_dim) for gcn=False"
    F = two_f // 2
    E_pad = _round_up(E, 128)
    ws = jnp.pad(weight[:, :F], ((0, E_pad - E), (0, 0))).astype(jnp.bfloat16)
    wn = jnp.pad(weight[:, F:], ((0, E_pad - E), (0, 0))).astype(jnp.bfloat16)
    return ws, wn


def _select_tiles(B, U, F, E_pad, *, tb_max=128, tu_max=2048,
                  vmem_budget=_VMEM_WORKING_BUDGET):
    """Pick (tb, tu, B_pad, U_pad).

    tb: batch tile.  It is also the lane axis of the transposed output block, so
        whenever B is split into multiple tiles tb is kept a multiple of 128
        (lane-dense, unmasked stores + v7x megacore sharding of the B axis).
    tu: reduction tile over the unique-neighbor axis.  tu == U_pad whenever the
        (U_pad, F) bf16 embed fits the working budget, so embed is DMA'd from HBM
        once and stays VMEM-resident instead of being re-streamed per B tile.
    """
    B8 = _round_up(B, 8)
    tb = min(tb_max, B8)
    if B8 // tb < 2 and B8 >= 2 * 128:
        # v7x megacore: give the "parallel" B axis >= 2 blocks (one per TensorCore)
        # whenever that can be done with a lane-dense (128-multiple) output tile.
        tb = _round_up(-(-B8 // 2), 128)
    B_pad = _round_up(B8, tb)

    # VMEM already spoken for (double-buffered streamed tiles + resident weights
    # + f32 accumulator).  Weights are grid-constant, so they are only DMA'd once,
    # but the pipeline still allocates 2 buffers for them -> budget 2x.
    fixed = (2 * tb * F * 2              # self-feat tile (bf16) x2 buffers
             + 2 * tb * 4                # inv_deg tile (f32) x2 buffers
             + 2 * (2 * E_pad * F * 2)   # W_self + W_neigh (bf16) x2 buffers each
             + 2 * E_pad * tb * 4        # output tile (f32) x2 buffers
             + tb * F * 4)               # f32 accumulator scratch
    per_tu_col = 2 * tb * 1 + 2 * F * 2  # mask (int8) + embed (bf16), double-buffered
    tu_fit = max(128, ((vmem_budget - fixed) // per_tu_col) // 128 * 128)

    U128 = _round_up(U, 128)
    tu = min(U128, tu_max, tu_fit)
    U_pad = _round_up(U128, tu)
    return tb, tu, B_pad, U_pad


@partial(jax.jit, static_argnames=("embed_dim", "tb_max", "tu_max"))
def encoder_forward(mask_bin, inv_deg, embed_matrix, self_feats, ws_p, wn_p,
                    *, embed_dim, tb_max=128, tu_max=2048):
    """Fused GraphSAGE Encoder forward. Returns (embed_dim, batch) float32.

    mask_bin     : (B, U) binary (0/1) neighbor-membership mask
    inv_deg      : (B,) or (B, 1) float32, 1 / num_sampled_neighbors per batch row
    embed_matrix : (U, F) features of the unique sampled neighbors
    self_feats   : (B, F) features of the batch nodes
    ws_p, wn_p   : outputs of prepare_encoder_weights (padded (E_pad, F), bf16)
    """
    B, U = mask_bin.shape
    E_pad, F = ws_p.shape
    assert embed_matrix.shape == (U, F)
    assert self_feats.shape == (B, F)

    tb, tu, B_pad, U_pad = _select_tiles(B, U, F, E_pad,
                                         tb_max=tb_max, tu_max=tu_max)

    bf16 = jnp.bfloat16
    mask_p = jnp.pad(mask_bin.astype(jnp.int8), ((0, B_pad - B), (0, U_pad - U)))
    embed_p = jnp.pad(embed_matrix, ((0, U_pad - U), (0, 0))).astype(bf16)
    self_p = jnp.pad(self_feats, ((0, B_pad - B), (0, 0))).astype(bf16)
    inv_p = jnp.pad(jnp.reshape(inv_deg.astype(jnp.float32), (B, 1)),
                    ((0, B_pad - B), (0, 0)), constant_values=1.0)

    grid = (B_pad // tb, U_pad // tu)

    # Advisory cost hint for XLA's scheduler around the custom call.
    embed_passes = 1 if tu == U_pad else (B_pad // tb)
    cost = pl.CostEstimate(
        flops=2 * B_pad * U_pad * F + 4 * B_pad * E_pad * F,
        transcendentals=0,
        bytes_accessed=(B_pad * U_pad                      # int8 mask
                        + embed_passes * U_pad * F * 2     # bf16 embed
                        + B_pad * F * 2 + B_pad * 4        # self feats + inv_deg
                        + 2 * E_pad * F * 2                # W_self / W_neigh
                        + E_pad * B_pad * 4))              # f32 output

    out = pl.pallas_call(
        encoder_kernel,
        out_shape=jax.ShapeDtypeStruct((E_pad, B_pad), jnp.float32),
        grid_spec=pltpu.PrefetchScalarGridSpec(
            num_scalar_prefetch=0,
            grid=grid,
            in_specs=[
                pl.BlockSpec((tb, tu), lambda i, k: (i, k)),    # mask (int8, streamed)
                pl.BlockSpec((tu, F), lambda i, k: (k, 0)),     # embed (resident if tu==U_pad)
                pl.BlockSpec((tb, F), lambda i, k: (i, 0)),     # self feats
                pl.BlockSpec((tb, 1), lambda i, k: (i, 0)),     # inv_deg (f32 post-scale)
                pl.BlockSpec((E_pad, F), lambda i, k: (0, 0)),  # W_self  (grid-constant, one DMA)
                pl.BlockSpec((E_pad, F), lambda i, k: (0, 0)),  # W_neigh (grid-constant, one DMA)
            ],
            out_specs=pl.BlockSpec((E_pad, tb), lambda i, k: (0, i)),  # out^T, lane-dense
            scratch_shapes=[pltpu.VMEM((tb, F), jnp.float32)],  # neigh-sum accumulator
        ),
        compiler_params=pltpu.CompilerParams(
            dimension_semantics=("parallel", "arbitrary"),
            vmem_limit_bytes=_VMEM_LIMIT_BYTES),
        cost_estimate=cost,
    )(mask_p, embed_p, self_p, inv_p, ws_p, wn_p)

    # Already in torch's (embed_dim, batch) layout; just drop padding.
    return out[:embed_dim, :B]


# ----------------------------------------------------------------------------
# Host-side glue mirroring MeanAggregator.forward's Python preprocessing
# ----------------------------------------------------------------------------
if __name__ == "__main__":
    num_total_nodes = 64
    feat_dim = 32          # F
    embed_dim = 32         # E
    num_sample = 5
    batch_nodes = list(range(8))   # B = 8

    # deterministic synthetic graph: node i <-> {i+1 .. i+6 mod N}
    adj_lists = defaultdict(set)
    for i in range(num_total_nodes):
        for d in range(1, 7):
            j = (i + d) % num_total_nodes
            adj_lists[i].add(j)
            adj_lists[j].add(i)

    key = jax.random.PRNGKey(0)
    k_feat, k_w = jax.random.split(key)
    features_table = jax.random.normal(
        k_feat, (num_total_nodes, feat_dim), dtype=jnp.float32)

    # Xavier-uniform init for weight (embed_dim, 2*feat_dim), gcn=False
    fan_out, fan_in = embed_dim, 2 * feat_dim
    bound = float(np.sqrt(6.0 / (fan_in + fan_out)))
    weight = jax.random.uniform(
        k_w, (embed_dim, 2 * feat_dim), minval=-bound, maxval=bound,
        dtype=jnp.float32)

    # --- MeanAggregator preprocessing (host Python, as in the PyTorch module) ---
    random.seed(0)
    to_neighs = [adj_lists[int(n)] for n in batch_nodes]
    samp_neighs = [
        set(random.sample(sorted(tn), num_sample)) if len(tn) >= num_sample else tn
        for tn in to_neighs
    ]
    unique_nodes_list = sorted(set.union(*samp_neighs))   # sorted => deterministic
    unique_nodes = {n: i for i, n in enumerate(unique_nodes_list)}

    Bn, Un = len(samp_neighs), len(unique_nodes_list)
    mask_np = np.zeros((Bn, Un), dtype=np.int8)           # BINARY mask (no 1/deg baked in)
    for i, samp_neigh in enumerate(samp_neighs):
        for n in samp_neigh:
            mask_np[i, unique_nodes[n]] = 1
    deg = mask_np.sum(axis=1).astype(np.float32)
    inv_deg_np = np.where(deg > 0.0, 1.0 / np.maximum(deg, 1.0), 1.0).astype(np.float32)

    mask_bin = jnp.asarray(mask_np)                       # (B, U) int8 binary
    inv_deg = jnp.asarray(inv_deg_np)                     # (B,) f32
    embed_matrix = features_table[jnp.asarray(unique_nodes_list, dtype=jnp.int32)]
    self_feats = features_table[jnp.asarray(batch_nodes, dtype=jnp.int32)]

    # Weights padded / split / bf16-cast ONCE (reused across forward calls).
    ws_p, wn_p = prepare_encoder_weights(weight)

    # --- run kernel ------------------------------------------------------
    out = encoder_forward(mask_bin, inv_deg, embed_matrix, self_feats, ws_p, wn_p,
                          embed_dim=embed_dim)
    out = jax.block_until_ready(out)

    # --- reference in plain JAX with the same bf16 inputs / f32 accumulation ---
    bf16 = jnp.bfloat16
    F_ = feat_dim
    neigh = jnp.dot(mask_bin.astype(bf16), embed_matrix.astype(bf16),
                    preferred_element_type=jnp.float32)
    neigh = (neigh * inv_deg[:, None]).astype(bf16)
    self_bf = self_feats.astype(bf16)
    ws = weight[:, :F_].astype(bf16)
    wn = weight[:, F_:].astype(bf16)
    out_ref = jnp.maximum(
        lax.dot_general(ws, self_bf, dimension_numbers=(((1,), (1,)), ((), ())),
                        preferred_element_type=jnp.float32)
        + lax.dot_general(wn, neigh, dimension_numbers=(((1,), (1,)), ((), ())),
                          preferred_element_type=jnp.float32),
        0.0)                                              # (E, B)

    assert out.shape == (embed_dim, len(batch_nodes))
    np.testing.assert_allclose(np.asarray(out), np.asarray(out_ref),
                               rtol=2e-2, atol=2e-2)

    print("KERNEL_OK")
</pallas_src>

<mosaic_0001>
module attributes {stable_mosaic.version = 11 : i64} {
  func.func @encoder_kernel(%arg0: i32, %arg1: i32, %arg2: memref<8x128xi8, #tpu.memory_space<vmem>>, %arg3: memref<128x32xbf16, #tpu.memory_space<vmem>>, %arg4: memref<8x32xbf16, #tpu.memory_space<vmem>>, %arg5: memref<8x1xf32, #tpu.memory_space<vmem>>, %arg6: memref<128x32xbf16, #tpu.memory_space<vmem>>, %arg7: memref<128x32xbf16, #tpu.memory_space<vmem>>, %arg8: memref<128x8xf32, #tpu.memory_space<vmem>>, %arg9: memref<8x32xf32, #tpu.memory_space<vmem>>) attributes {dimension_semantics = [#tpu.dimension_semantics<parallel>, #tpu.dimension_semantics<arbitrary>], iteration_bounds = array<i64: 1, 1>, scalar_prefetch = 0 : i64, scratch_operands = 1 : i64, tpu.core_type = #tpu.core_type<tc>, window_params = [{transform_indices = @transform_0, window_bounds = array<i64: 8, 128>}, {transform_indices = @transform_1, window_bounds = array<i64: 128, 32>}, {transform_indices = @transform_2, window_bounds = array<i64: 8, 32>}, {transform_indices = @transform_3, window_bounds = array<i64: 8, 1>}, {pipeline_mode = #tpu.pipeline_mode<synchronous>, transform_indices = @transform_4, window_bounds = array<i64: 128, 32>}, {pipeline_mode = #tpu.pipeline_mode<synchronous>, transform_indices = @transform_5, window_bounds = array<i64: 128, 32>}, {transform_indices = @transform_6, window_bounds = array<i64: 128, 8>}]} {
    %c0_i32 = arith.constant 0 : i32
    %0 = arith.cmpi eq, %arg1, %c0_i32 : i32
    %1 = arith.extui %0 : i1 to i32
    %c0_i32_0 = arith.constant 0 : i32
    %2 = arith.cmpi ne, %1, %c0_i32_0 : i32
    scf.if %2 {
      %cst_10 = arith.constant 0.000000e+00 : f32
      %13 = vector.broadcast %cst_10 : f32 to vector<8x32xf32>
      %c0_11 = arith.constant 0 : index
      %c0_12 = arith.constant 0 : index
      %14 = vector.load %arg9[%c0_11, %c0_12] : memref<8x32xf32, #tpu.memory_space<vmem>>, vector<8x32xf32>
      tpu.vector_store %arg9[%c0_11, %c0_12], %13 {strides = array<i32>} : memref<8x32xf32, #tpu.memory_space<vmem>>, vector<8x32xf32>,
    } else {
    }
    %c0 = arith.constant 0 : index
    %c0_1 = arith.constant 0 : index
    %3 = vector.load %arg9[%c0, %c0_1] : memref<8x32xf32, #tpu.memory_space<vmem>>, vector<8x32xf32>
    %c0_2 = arith.constant 0 : index
    %c0_3 = arith.constant 0 : index
    %4 = vector.load %arg2[%c0_2, %c0_3] : memref<8x128xi8, #tpu.memory_space<vmem>>, vector<8x128xi8>
    %5 = arith.sitofp %4 : vector<8x128xi8> to vector<8x128xbf16>
    %c0_4 = arith.constant 0 : index
    %c0_5 = arith.constant 0 : index
    %6 = vector.load %arg3[%c0_4, %c0_5] : memref<128x32xbf16, #tpu.memory_space<vmem>>, vector<128x32xbf16>
    %cst = arith.constant dense<0.000000e+00> : vector<8x32xf32>
    %7 = tpu.matmul %5, %6, %cst {dimension_numbers = #tpu.dot_dimension_numbers<[1], [0], [0], [1], [0, 0, 1, 1], [], []>} : vector<8x128xbf16>, vector<128x32xbf16>, vector<8x32xf32> -> vector<8x32xf32>
    %8 = arith.addf %3, %7 : vector<8x32xf32>
    %c0_6 = arith.constant 0 : index
    %c0_7 = arith.constant 0 : index
    %9 = vector.load %arg9[%c0_6, %c0_7] : memref<8x32xf32, #tpu.memory_space<vmem>>, vector<8x32xf32>
    tpu.vector_store %arg9[%c0_6, %c0_7], %8 {strides = array<i32>} : memref<8x32xf32, #tpu.memory_space<vmem>>, vector<8x32xf32>,
    %c0_i32_8 = arith.constant 0 : i32
    %10 = arith.cmpi eq, %arg1, %c0_i32_8 : i32
    %11 = arith.extui %10 : i1 to i32
    %c0_i32_9 = arith.constant 0 : i32
    %12 = arith.cmpi ne, %11, %c0_i32_9 : i32
    scf.if %12 {
      %c0_10 = arith.constant 0 : index
      %c0_11 = arith.constant 0 : index
      %13 = vector.load %arg9[%c0_10, %c0_11] : memref<8x32xf32, #tpu.memory_space<vmem>>, vector<8x32xf32>
      %c0_12 = arith.constant 0 : index
      %c0_13 = arith.constant 0 : index
      %14 = vector.load %arg5[%c0_12, %c0_13] : memref<8x1xf32, #tpu.memory_space<vmem>>, vector<8x1xf32>
      %15 = vector.broadcast %14 : vector<8x1xf32> to vector<8x32xf32>
      %16 = arith.mulf %13, %15 : vector<8x32xf32>
      %17 = arith.truncf %16 : vector<8x32xf32> to vector<8x32xbf16>
      %c0_14 = arith.constant 0 : index
      %c0_15 = arith.constant 0 : index
      %18 = vector.load %arg6[%c0_14, %c0_15] : memref<128x32xbf16, #tpu.memory_space<vmem>>, vector<128x32xbf16>
      %c0_16 = arith.constant 0 : index
      %c0_17 = arith.constant 0 : index
      %19 = vector.load %arg4[%c0_16, %c0_17] : memref<8x32xbf16, #tpu.memory_space<vmem>>, vector<8x32xbf16>
      %cst_18 = arith.constant dense<0.000000e+00> : vector<128x8xf32>
      %20 = tpu.matmul %18, %19, %cst_18 {dimension_numbers = #tpu.dot_dimension_numbers<[1], [1], [0], [0], [0, 0, 1, 0], [], []>} : vector<128x32xbf16>, vector<8x32xbf16>, vector<128x8xf32> -> vector<128x8xf32>
      %c0_19 = arith.constant 0 : index
      %c0_20 = arith.constant 0 : index
      %21 = vector.load %arg7[%c0_19, %c0_20] : memref<128x32xbf16, #tpu.memory_space<vmem>>, vector<128x32xbf16>
      %cst_21 = arith.constant dense<0.000000e+00> : vector<128x8xf32>
      %22 = tpu.matmul %21, %17, %cst_21 {dimension_numbers = #tpu.dot_dimension_numbers<[1], [1], [0], [0], [0, 0, 1, 0], [], []>} : vector<128x32xbf16>, vector<8x32xbf16>, vector<128x8xf32> -> vector<128x8xf32>
      %23 = arith.addf %20, %22 : vector<128x8xf32>
      %cst_22 = arith.constant 0.000000e+00 : f32
      %24 = vector.broadcast %cst_22 : f32 to vector<128x8xf32>
      %25 = arith.maximumf %23, %24 : vector<128x8xf32>
      %c0_23 = arith.constant 0 : index
      %c0_24 = arith.constant 0 : index
      %26 = vector.load %arg8[%c0_23, %c0_24] : memref<128x8xf32, #tpu.memory_space<vmem>>, vector<128x8xf32>
      tpu.vector_store %arg8[%c0_23, %c0_24], %25 {strides = array<i32>} : memref<128x8xf32, #tpu.memory_space<vmem>>, vector<128x8xf32>,
    } else {
    }
    return
  }
  func.func @transform_0(%arg0: i32, %arg1: i32) -> (i32, i32) {
    %c0_i32 = arith.constant 0 : i32
    return %arg0, %arg1 : i32, i32
  }
  func.func @transform_1(%arg0: i32, %arg1: i32) -> (i32, i32) {
    %c0_i32 = arith.constant 0 : i32
    %c0_i32_0 = arith.constant 0 : i32
    return %arg1, %c0_i32 : i32, i32
  }
  func.func @transform_2(%arg0: i32, %arg1: i32) -> (i32, i32) {
    %c0_i32 = arith.constant 0 : i32
    %c0_i32_0 = arith.constant 0 : i32
    return %arg0, %c0_i32 : i32, i32
  }
  func.func @transform_3(%arg0: i32, %arg1: i32) -> (i32, i32) {
    %c0_i32 = arith.constant 0 : i32
    %c0_i32_0 = arith.constant 0 : i32
    return %arg0, %c0_i32 : i32, i32
  }
  func.func @transform_4(%arg0: i32, %arg1: i32) -> (i32, i32) {
    %c0_i32 = arith.constant 0 : i32
    %c0_i32_0 = arith.constant 0 : i32
    %c0_i32_1 = arith.constant 0 : i32
    return %c0_i32, %c0_i32_0 : i32, i32
  }
  func.func @transform_5(%arg0: i32, %arg1: i32) -> (i32, i32) {
    %c0_i32 = arith.constant 0 : i32
    %c0_i32_0 = arith.constant 0 : i32
    %c0_i32_1 = arith.constant 0 : i32
    return %c0_i32, %c0_i32_0 : i32, i32
  }
  func.func @transform_6(%arg0: i32, %arg1: i32) -> (i32, i32) {
    %c0_i32 = arith.constant 0 : i32
    %c0_i32_0 = arith.constant 0 : i32
    return %c0_i32, %arg0 : i32, i32
  }
}

</mosaic_0001>

<llo_original>
// kernel: encoder_forward.1
$region0: #{encoder_forward.1}
  #allocation0 [shape = 'u32[]', space=smem, size = 0x4, offset = 0x4, fixed_abs, tag = 'smem constant byte address 0x4 - core index']
  #allocation1 [shape = 'u32[72,128]{1,0:T(1,128)}', space=vmem, size = 0x9000, scoped, tag = 'internal scratch']
  #allocation2 [shape = 'f32[8,32]{1,0:T(8,128)}', space=vmem, size = 0x1000, scoped, tag = 'scratch operand']
  %s0 = inlined_call_operand.vmem [shape: s8[8,128], index: 0, kind: input, shape index: {}]
  %s1 = inlined_call_operand.vmem [shape: bf16[128,32], index: 1, kind: input, shape index: {}]
  %s2 = inlined_call_operand.vmem [shape: bf16[8,32], index: 2, kind: input, shape index: {}]
  %s3 = inlined_call_operand.vmem [shape: f32[8,1], index: 3, kind: input, shape index: {}]
  %s4 = inlined_call_operand.vmem [shape: bf16[128,32], index: 4, kind: input, shape index: {}]
  %s5 = inlined_call_operand.vmem [shape: bf16[128,32], index: 5, kind: input, shape index: {}]
  %s6 = inlined_call_operand.vmem [shape: f32[128,8], index: 6, kind: output, shape index: {}]
  %s7 = sld [smem:[#allocation0]]
  $region42: #{encoder_forward.1} parent=0
    _
  %s9 = ssub.s32 1, %s7
  %s10 = scalar_select 0, %s9, %s7
  // Predicated region
  $region2: #{encoder_forward.1} parent=0 // pred_check
    _
  $region3: #{encoder_forward.1} parent=0 // pred_check_branch
    %12 = sbr.rel (0) target = $region5
  $region4: #{encoder_forward.1} parent=0 // pred_region
    _
  $region5: #{encoder_forward.1} parent=0 // pred_fallthru
    _
  // Predicated region
  $region6: #{encoder_forward.1} parent=0 // pred_check
    _
  $region7: #{encoder_forward.1} parent=0 // pred_check_branch
    %14 = sbr.rel (0) target = $region9
  $region8: #{encoder_forward.1} parent=0 // pred_region
    _
  $region9: #{encoder_forward.1} parent=0 // pred_fallthru
    _
  // Predicated region
  $region10: #{encoder_forward.1} parent=0 // pred_check
    _
  $region11: #{encoder_forward.1} parent=0 // pred_check_branch
    %16 = sbr.rel (0) target = $region13
  $region12: #{encoder_forward.1} parent=0 // pred_region
    _
  $region13: #{encoder_forward.1} parent=0 // pred_fallthru
    _
  // Predicated region
  $region14: #{encoder_forward.1} parent=0 // pred_check
    _
  $region15: #{encoder_forward.1} parent=0 // pred_check_branch
    %18 = sbr.rel (0) target = $region17
  $region16: #{encoder_forward.1} parent=0 // pred_region
    _
  $region17: #{encoder_forward.1} parent=0 // pred_fallthru
    _
  // Predicated region
  $region18: #{encoder_forward.1} parent=0 // pred_check
    _
  $region19: #{encoder_forward.1} parent=0 // pred_check_branch
    %20 = sbr.rel (0) target = $region21
  $region20: #{encoder_forward.1} parent=0 // pred_region
    _
  $region21: #{encoder_forward.1} parent=0 // pred_fallthru
    _
  // Predicated region
  $region22: #{encoder_forward.1} parent=0 // pred_check
    _
  $region23: #{encoder_forward.1} parent=0 // pred_check_branch
    %22 = sbr.rel (0) target = $region25
  $region24: #{encoder_forward.1} parent=0 // pred_region
    _
  $region25: #{encoder_forward.1} parent=0 // pred_fallthru
    _
  %p24 = scmp.eq.s32.totalorder 0, 0
  // Predicated region
  $region26: #{encoder_forward.1} parent=0 // pred_check
    %p25 = pneg %p24
  $region27: #{encoder_forward.1} parent=0 // pred_check_branch
    %27 = sbr.rel (%p25) target = $region29
  $region28: #{encoder_forward.1} parent=0 // pred_region
    %vm28 = vcmask 261120
    %29 = vst.msk [vmem:[#allocation2] sm:$0xff] %vm28, 0.0
  $region29: #{encoder_forward.1} parent=0 // pred_fallthru
    _
  %v30 = vld [vmem:[#allocation2] sm:$0xff]
  %v31 = vld [vmem:[%s0] sm:$0x3]
  %v32 = vunpack.c.0.s8 %v31
  %v33 = vcvt.s32.f32 %v32
  %v34 = vpack.c.bf16 %v33, %v33
  %v35 = vld [vmem:[%s1] sm:$0xf]
  %v36 = vld [vmem:[%s1 + $0x4] sm:$0xf]
  %v37 = vld [vmem:[%s1 + $0x8] sm:$0xf]
  %v38 = vld [vmem:[%s1 + $0xc] sm:$0xf]
  %v39 = vld [vmem:[%s1 + $0x10] sm:$0xf]
  %v40 = vld [vmem:[%s1 + $0x14] sm:$0xf]
  %v41 = vld [vmem:[%s1 + $0x18] sm:$0xf]
  %v42 = vld [vmem:[%s1 + $0x1c] sm:$0xf]
  %v43 = vld [vmem:[%s1 + $0x20] sm:$0xf]
  %v44 = vld [vmem:[%s1 + $0x24] sm:$0xf]
  %v45 = vld [vmem:[%s1 + $0x28] sm:$0xf]
  %v46 = vld [vmem:[%s1 + $0x2c] sm:$0xf]
  %v47 = vld [vmem:[%s1 + $0x30] sm:$0xf]
  %v48 = vld [vmem:[%s1 + $0x34] sm:$0xf]
  %v49 = vld [vmem:[%s1 + $0x38] sm:$0xf]
  %v50 = vld [vmem:[%s1 + $0x3c] sm:$0xf]
  %v67 = vunpack.c.l.b16 %v35
  %v68 = vunpack.c.l.b16 %v36
  %v69 = vunpack.c.l.b16 %v37
  %v70 = vunpack.c.l.b16 %v38
  %v71 = vunpack.c.l.b16 %v39
  %v72 = vunpack.c.l.b16 %v40
  %v73 = vunpack.c.l.b16 %v41
  %v74 = vunpack.c.l.b16 %v42
  %v75 = vunpack.c.l.b16 %v43
  %v76 = vunpack.c.l.b16 %v44
  %v77 = vunpack.c.l.b16 %v45
  %v78 = vunpack.c.l.b16 %v46
  %v79 = vunpack.c.l.b16 %v47
  %v80 = vunpack.c.l.b16 %v48
  %v81 = vunpack.c.l.b16 %v49
  %v82 = vunpack.c.l.b16 %v50
  %v83 = vpack.c.b16 %v68, %v67
  %v84 = vpack.c.b16 %v70, %v69
  %v85 = vpack.c.b16 %v72, %v71
  %v86 = vpack.c.b16 %v74, %v73
  %v87 = vpack.c.b16 %v76, %v75
  %v88 = vpack.c.b16 %v78, %v77
  %v89 = vpack.c.b16 %v80, %v79
  %v90 = vpack.c.b16 %v82, %v81
  %99 = vmatpush.bf16.msra.mxu0 %v90
  %100 = vmatpush.bf16.msra.mxu0 %v89
  %101 = vmatpush.bf16.msra.mxu0 %v88
  %102 = vmatpush.bf16.msra.mxu0 %v87
  %103 = vmatpush.bf16.msra.mxu0 %v86
  %104 = vmatpush.bf16.msra.mxu0 %v85
  %105 = vmatpush.bf16.msra.mxu0 %v84
  %106 = vmatpush.bf16.msra.mxu0 %v83
  %107 = vmatmul.bf16.gmra.mxu0 %v34
  %v108 = vpop.f32.mrf.mxu0
  %v109 = vadd.f32 0.0, %v108
  %v110 = vpop.f32.mrf.mxu0
  %111 = vdwg.mxu0
  %v112 = vadd.f32 %v30, %v109
  %vm113 = vcmask 261120
  %114 = vst.msk [vmem:[#allocation2] sm:$0xff] %vm113, %v112
  // Predicated region
  $region30: #{encoder_forward.1} parent=0 // pred_check
    %p115 = pneg %p24
  $region31: #{encoder_forward.1} parent=0 // pred_check_branch
    %117 = sbr.rel (%p115) target = $region33
  $region32: #{encoder_forward.1} parent=0 // pred_region
    %v118 = vld [vmem:[#allocation2] sm:$0xff]
    %v119 = vld [vmem:[%s3] sm:$0xff]
    %121 = vset.pattern.permute.xlu0 0
    %122 = vperm.xlu0 %121, %v119
    %v123 = vpop.permute.xlu0 %122
    %v125 = vmul.f32 %v118, %v123
    %v126 = vpack.c.bf16 %v125, %v125
    %v127 = vld [vmem:[%s4] sm:$0xf]
    %v128 = vld [vmem:[%s4 + $0x4] sm:$0xf]
    %v129 = vld [vmem:[%s4 + $0x8] sm:$0xf]
    %v130 = vld [vmem:[%s4 + $0xc] sm:$0xf]
    %v131 = vld [vmem:[%s4 + $0x10] sm:$0xf]
    %v132 = vld [vmem:[%s4 + $0x14] sm:$0xf]
    %v133 = vld [vmem:[%s4 + $0x18] sm:$0xf]
    %v134 = vld [vmem:[%s4 + $0x1c] sm:$0xf]
    %v135 = vld [vmem:[%s4 + $0x20] sm:$0xf]
    %v136 = vld [vmem:[%s4 + $0x24] sm:$0xf]
    %v137 = vld [vmem:[%s4 + $0x28] sm:$0xf]
    %v138 = vld [vmem:[%s4 + $0x2c] sm:$0xf]
    %v139 = vld [vmem:[%s4 + $0x30] sm:$0xf]
    %v140 = vld [vmem:[%s4 + $0x34] sm:$0xf]
    %v141 = vld [vmem:[%s4 + $0x38] sm:$0xf]
    %v142 = vld [vmem:[%s4 + $0x3c] sm:$0xf]
    %v143 = vld [vmem:[%s2] sm:$0xf]
    %v144 = vld [vmem:[%s5] sm:$0xf]
    %v145 = vld [vmem:[%s5 + $0x4] sm:$0xf]
    %v146 = vld [vmem:[%s5 + $0x8] sm:$0xf]
    %v147 = vld [vmem:[%s5 + $0xc] sm:$0xf]
    %v148 = vld [vmem:[%s5 + $0x10] sm:$0xf]
    %v149 = vld [vmem:[%s5 + $0x14] sm:$0xf]
    %v150 = vld [vmem:[%s5 + $0x18] sm:$0xf]
    %v151 = vld [vmem:[%s5 + $0x1c] sm:$0xf]
    %v152 = vld [vmem:[%s5 + $0x20] sm:$0xf]
    %v153 = vld [vmem:[%s5 + $0x24] sm:$0xf]
    %v154 = vld [vmem:[%s5 + $0x28] sm:$0xf]
    %v155 = vld [vmem:[%s5 + $0x2c] sm:$0xf]
    %v156 = vld [vmem:[%s5 + $0x30] sm:$0xf]
    %v157 = vld [vmem:[%s5 + $0x34] sm:$0xf]
    %v158 = vld [vmem:[%s5 + $0x38] sm:$0xf]
    %v159 = vld [vmem:[%s5 + $0x3c] sm:$0xf]
    %v176 = vunpack.c.l.b16 %v144
    %v177 = vunpack.c.l.b16 %v145
    %v178 = vunpack.c.l.b16 %v146
    %v179 = vunpack.c.l.b16 %v147
    %v180 = vunpack.c.l.b16 %v148
    %v181 = vunpack.c.l.b16 %v149
    %v182 = vunpack.c.l.b16 %v150
    %v183 = vunpack.c.l.b16 %v151
    %v184 = vunpack.c.l.b16 %v152
    %v185 = vunpack.c.l.b16 %v153
    %v186 = vunpack.c.l.b16 %v154
    %v187 = vunpack.c.l.b16 %v155
    %v188 = vunpack.c.l.b16 %v156
    %v189 = vunpack.c.l.b16 %v157
    %v190 = vunpack.c.l.b16 %v158
    %v191 = vunpack.c.l.b16 %v159
    %v192 = vpack.c.b16 %v177, %v176
    %v193 = vpack.c.b16 %v179, %v178
    %v194 = vpack.c.b16 %v181, %v180
    %v195 = vpack.c.b16 %v183, %v182
    %v196 = vpack.c.b16 %v185, %v184
    %v197 = vpack.c.b16 %v187, %v186
    %v198 = vpack.c.b16 %v189, %v188
    %v199 = vpack.c.b16 %v191, %v190
    %v201 = vsel %vm113, %v192, 0
    %v204 = vsel %vm113, %v193, 0
    %v207 = vsel %vm113, %v194, 0
    %v210 = vsel %vm113, %v195, 0
    %v213 = vsel %vm113, %v196, 0
    %v216 = vsel %vm113, %v197, 0
    %v219 = vsel %vm113, %v198, 0
    %v222 = vsel %vm113, %v199, 0
    %v225 = vsel %vm113, %v126, 0
    %227 = vmatpush.bf16.xpose.msra.mxu0 0
    %228 = vmatpush.bf16.xpose.msra.mxu0 0
    %229 = vmatpush.bf16.xpose.msra.mxu0 0
    %230 = vmatpush.bf16.xpose.msra.mxu0 0
    %231 = vmatpush.bf16.xpose.msra.mxu0 0
    %232 = vmatpush.bf16.xpose.msra.mxu0 0
    %233 = vmatpush.bf16.xpose.msra.mxu0 0
    %234 = vmatpush.bf16.xpose.msra.mxu0 %v225
    %235 = vmatmul.bf16.gmra.mxu0 %v201
    %v236 = vpop.f32.mrf.mxu0
    %v237 = vadd.f32 0.0, %v236
    %v238 = vpop.f32.mrf.mxu0
    %v239 = vadd.f32 0.0, %v238
    %240 = vmatmul.bf16.gmra.mxu0 %v204
    %v241 = vpop.f32.mrf.mxu0
    %v242 = vadd.f32 0.0, %v241
    %v243 = vpop.f32.mrf.mxu0
    %v244 = vadd.f32 0.0, %v243
    %245 = vmatmul.bf16.gmra.mxu0 %v207
    %v246 = vpop.f32.mrf.mxu0
    %v247 = vadd.f32 0.0, %v246
    %v248 = vpop.f32.mrf.mxu0
    %v249 = vadd.f32 0.0, %v248
    %250 = vmatmul.bf16.gmra.mxu0 %v210
    %v251 = vpop.f32.mrf.mxu0
    %v252 = vadd.f32 0.0, %v251
    %v253 = vpop.f32.mrf.mxu0
    %v254 = vadd.f32 0.0, %v253
    %255 = vmatmul.bf16.gmra.mxu0 %v213
    %v256 = vpop.f32.mrf.mxu0
    %v257 = vadd.f32 0.0, %v256
    %v258 = vpop.f32.mrf.mxu0
    %v259 = vadd.f32 0.0, %v258
    %260 = vmatmul.bf16.gmra.mxu0 %v216
    %v261 = vpop.f32.mrf.mxu0
    %v262 = vadd.f32 0.0, %v261
    %v263 = vpop.f32.mrf.mxu0
    %v264 = vadd.f32 0.0, %v263
    %265 = vmatmul.bf16.gmra.mxu0 %v219
    %v266 = vpop.f32.mrf.mxu0
    %v267 = vadd.f32 0.0, %v266
    %v268 = vpop.f32.mrf.mxu0
    %v269 = vadd.f32 0.0, %v268
    %270 = vmatmul.bf16.gmra.mxu0 %v222
    %v271 = vpop.f32.mrf.mxu0
    %v272 = vadd.f32 0.0, %v271
    %v273 = vpop.f32.mrf.mxu0
    %v274 = vadd.f32 0.0, %v273
    %275 = vdwg.mxu0
    %v292 = vunpack.c.l.b16 %v127
    %v293 = vunpack.c.l.b16 %v128
    %v294 = vunpack.c.l.b16 %v129
    %v295 = vunpack.c.l.b16 %v130
    %v296 = vunpack.c.l.b16 %v131
    %v297 = vunpack.c.l.b16 %v132
    %v298 = vunpack.c.l.b16 %v133
    %v299 = vunpack.c.l.b16 %v134
    %v300 = vunpack.c.l.b16 %v135
    %v301 = vunpack.c.l.b16 %v136
    %v302 = vunpack.c.l.b16 %v137
    %v303 = vunpack.c.l.b16 %v138
    %v304 = vunpack.c.l.b16 %v139
    %v305 = vunpack.c.l.b16 %v140
    %v306 = vunpack.c.l.b16 %v141
    %v307 = vunpack.c.l.b16 %v142
    %v308 = vpack.c.b16 %v293, %v292
    %v309 = vpack.c.b16 %v295, %v294
    %v310 = vpack.c.b16 %v297, %v296
    %v311 = vpack.c.b16 %v299, %v298
    %v312 = vpack.c.b16 %v301, %v300
    %v313 = vpack.c.b16 %v303, %v302
    %v314 = vpack.c.b16 %v305, %v304
    %v315 = vpack.c.b16 %v307, %v306
    %v317 = vsel %vm113, %v308, 0
    %v320 = vsel %vm113, %v309, 0
    %v323 = vsel %vm113, %v310, 0
    %v326 = vsel %vm113, %v311, 0
    %v329 = vsel %vm113, %v312, 0
    %v332 = vsel %vm113, %v313, 0
    %v335 = vsel %vm113, %v314, 0
    %v338 = vsel %vm113, %v315, 0
    %v341 = vsel %vm113, %v143, 0
    %343 = vmatpush.bf16.xpose.msra.mxu0 0
    %344 = vmatpush.bf16.xpose.msra.mxu0 0
    %345 = vmatpush.bf16.xpose.msra.mxu0 0
    %346 = vmatpush.bf16.xpose.msra.mxu0 0
    %347 = vmatpush.bf16.xpose.msra.mxu0 0
    %348 = vmatpush.bf16.xpose.msra.mxu0 0
    %349 = vmatpush.bf16.xpose.msra.mxu0 0
    %350 = vmatpush.bf16.xpose.msra.mxu0 %v341
    %351 = vmatmul.bf16.gmra.mxu0 %v317
    %v352 = vpop.f32.mrf.mxu0
    %v353 = vadd.f32 %v237, %v352
    %v354 = vpop.f32.mrf.mxu0
    %v355 = vadd.f32 %v239, %v354
    %356 = vmatmul.bf16.gmra.mxu0 %v320
    %v357 = vpop.f32.mrf.mxu0
    %v358 = vadd.f32 %v242, %v357
    %v359 = vpop.f32.mrf.mxu0
    %v360 = vadd.f32 %v244, %v359
    %361 = vmatmul.bf16.gmra.mxu0 %v323
    %v362 = vpop.f32.mrf.mxu0
    %v363 = vadd.f32 %v247, %v362
    %v364 = vpop.f32.mrf.mxu0
    %v365 = vadd.f32 %v249, %v364
    %366 = vmatmul.bf16.gmra.mxu0 %v326
    %v367 = vpop.f32.mrf.mxu0
    %v368 = vadd.f32 %v252, %v367
    %v369 = vpop.f32.mrf.mxu0
    %v370 = vadd.f32 %v254, %v369
    %371 = vmatmul.bf16.gmra.mxu0 %v329
    %v372 = vpop.f32.mrf.mxu0
    %v373 = vadd.f32 %v257, %v372
    %v374 = vpop.f32.mrf.mxu0
    %v375 = vadd.f32 %v259, %v374
    %376 = vmatmul.bf16.gmra.mxu0 %v332
    %v377 = vpop.f32.mrf.mxu0
    %v378 = vadd.f32 %v262, %v377
    %v379 = vpop.f32.mrf.mxu0
    %v380 = vadd.f32 %v264, %v379
    %381 = vmatmul.bf16.gmra.mxu0 %v335
    %v382 = vpop.f32.mrf.mxu0
    %v383 = vadd.f32 %v267, %v382
    %v384 = vpop.f32.mrf.mxu0
    %v385 = vadd.f32 %v269, %v384
    %386 = vmatmul.bf16.gmra.mxu0 %v338
    %v387 = vpop.f32.mrf.mxu0
    %v388 = vadd.f32 %v272, %v387
    %v389 = vpop.f32.mrf.mxu0
    %v390 = vadd.f32 %v274, %v389
    %391 = vdwg.mxu0
    %v392 = vmax.f32 %v353, 0.0
    %v393 = vmax.f32 %v355, 0.0
    %v394 = vmax.f32 %v358, 0.0
    %v395 = vmax.f32 %v360, 0.0
    %v396 = vmax.f32 %v363, 0.0
    %v397 = vmax.f32 %v365, 0.0
    %v398 = vmax.f32 %v368, 0.0
    %v399 = vmax.f32 %v370, 0.0
    %v400 = vmax.f32 %v373, 0.0
    %v401 = vmax.f32 %v375, 0.0
    %v402 = vmax.f32 %v378, 0.0
    %v403 = vmax.f32 %v380, 0.0
    %v404 = vmax.f32 %v383, 0.0
    %v405 = vmax.f32 %v385, 0.0
    %v406 = vmax.f32 %v388, 0.0
    %v407 = vmax.f32 %v390, 0.0
    %vm408 = vcmask 64512
    %409 = vst.msk [vmem:[%s6] sm:$0xff] %vm408, %v392
    %410 = vst.msk [vmem:[%s6 + $0x8] sm:$0xff] %vm408, %v393
    %411 = vst.msk [vmem:[%s6 + $0x10] sm:$0xff] %vm408, %v394
    %412 = vst.msk [vmem:[%s6 + $0x18] sm:$0xff] %vm408, %v395
    %413 = vst.msk [vmem:[%s6 + $0x20] sm:$0xff] %vm408, %v396
    %414 = vst.msk [vmem:[%s6 + $0x28] sm:$0xff] %vm408, %v397
    %415 = vst.msk [vmem:[%s6 + $0x30] sm:$0xff] %vm408, %v398
    %416 = vst.msk [vmem:[%s6 + $0x38] sm:$0xff] %vm408, %v399
    %417 = vst.msk [vmem:[%s6 + $0x40] sm:$0xff] %vm408, %v400
    %418 = vst.msk [vmem:[%s6 + $0x48] sm:$0xff] %vm408, %v401
    %419 = vst.msk [vmem:[%s6 + $0x50] sm:$0xff] %vm408, %v402
    %420 = vst.msk [vmem:[%s6 + $0x58] sm:$0xff] %vm408, %v403
    %421 = vst.msk [vmem:[%s6 + $0x60] sm:$0xff] %vm408, %v404
    %422 = vst.msk [vmem:[%s6 + $0x68] sm:$0xff] %vm408, %v405
    %423 = vst.msk [vmem:[%s6 + $0x70] sm:$0xff] %vm408, %v406
    %424 = vst.msk [vmem:[%s6 + $0x78] sm:$0xff] %vm408, %v407
  $region33: #{encoder_forward.1} parent=0 // pred_fallthru
    _
  // Predicated region
  $region34: #{encoder_forward.1} parent=0 // pred_check
    _
  $region35: #{encoder_forward.1} parent=0 // pred_check_branch
    %426 = sbr.rel (0) target = $region37
  $region36: #{encoder_forward.1} parent=0 // pred_region
    _
  $region37: #{encoder_forward.1} parent=0 // pred_fallthru
    _
  // Predicated region
  $region38: #{encoder_forward.1} parent=0 // pred_check
    _
  $region39: #{encoder_forward.1} parent=0 // pred_check_branch
    %428 = sbr.rel (0) target = $region41
  $region40: #{encoder_forward.1} parent=0 // pred_region
    _
  $region41: #{encoder_forward.1} parent=0 // pred_fallthru
    _

</llo_original>
